<compile_context>
chip_gen: v7x
topology: tpu7x:2x2x1
jax: 0.10.0
libtpu: 0.0.40
codegen_flags: <defaults>
</compile_context>

<pallas_src>
import math
import numpy as np
import jax
import jax.numpy as jnp
from jax.experimental import pallas as pl
from jax.experimental.pallas import tpu as pltpu


# ---------------------------------------------------------------------------
# Hardware queries (defensive: fall back to conservative values).
# ---------------------------------------------------------------------------
def _vmem_budget():
    """Returns (physical VMEM capacity, scoped-vmem limit to request) in bytes."""
    try:
        cap = int(pltpu.get_tpu_info().vmem_capacity_bytes)
    except Exception:
        cap = 0
    if cap <= 0:
        cap = 64 << 20                      # conservative (v7x-sized) default
    if cap <= (64 << 20):                   # v7x: 64 MiB per TensorCore
        limit = 40 << 20
    else:                                   # v5e / v6e / v5p: 128 MiB
        limit = 96 << 20
    return cap, limit


def _num_tensorcores():
    """Best-effort TensorCore count; defaults to 1 (no pixel split)."""
    try:
        info = pltpu.get_tpu_info()
        for name in ("num_tensorcores", "tensorcore_count", "num_cores",
                     "core_count"):
            v = getattr(info, name, None)
            if isinstance(v, int) and v > 0:
                return int(v)
    except Exception:
        pass
    return 1


# ---------------------------------------------------------------------------
# Per-tile focal loss (shared by the 2-D and 3-D kernels).
# ---------------------------------------------------------------------------
def _focal_tile(logits, tgt, w, valid, *, gamma, label_smoothing, num_classes):
    """logits (C, *pix) f32, tgt (1, *pix) i32, w (C, 1[,1]) f32,
    valid (1, *pix) bool  ->  (1, *pix) f32 focal loss.  Class axis = 0."""
    # numerically-stable log-softmax over the class axis
    m = jnp.max(logits, axis=0, keepdims=True)
    lse = m + jnp.log(jnp.sum(jnp.exp(logits - m), axis=0, keepdims=True))
    logp = logits - lse                                        # (C, *pix)

    # fused: weighted log-probs reused by both the NLL gather and smoothing
    wlogp = w * logp                                           # (C, *pix)
    cls = jax.lax.broadcasted_iota(jnp.int32, logits.shape, 0)
    onehot = cls == tgt                                        # (C, *pix)
    nll = -jnp.sum(jnp.where(onehot, wlogp, 0.0), axis=0, keepdims=True)

    if label_smoothing > 0.0:
        smooth = -jnp.sum(wlogp, axis=0, keepdims=True) * (
            label_smoothing / num_classes)
        ce = (1.0 - label_smoothing) * nll + smooth
    else:
        ce = nll
    ce = jnp.where(valid, ce, 0.0)           # ignore_index / out-of-bounds -> 0

    pt = jnp.exp(-ce)
    x = jnp.maximum(1.0 - pt, 0.0)           # clamp: protects odd gammas too
    g_int = int(gamma)
    if float(g_int) == float(gamma) and 0 <= g_int <= 8:
        # integer gamma: pure VALU, no EUP log+exp from jnp.power
        if g_int == 0:
            focal = jnp.ones_like(x)
        else:
            focal = x
            for _ in range(g_int - 1):
                focal = focal * x
    else:
        focal = jnp.power(x, gamma)
    return focal * ce


# ---------------------------------------------------------------------------
# Kernel factory.  Works for both layouts:
#   2-D tile: logits (C, TM),       tgt (1, TM)        -> loss (1, TM)
#   3-D tile: logits (C, SB, 128),  tgt (1, SB, 128)   -> loss (1, SB, 128)
# `tile`/`total` refer to the tiled pixel axis (lanes for 2-D, sublane-rows for
# 3-D), which is axis 1 of the target/loss block in both layouts.
# ---------------------------------------------------------------------------
def _make_kernel(*, gamma, ignore_index, label_smoothing, num_classes,
                 tile, total, p_split, j_inner, mask_oob, accumulate):

    def kernel(w_ref, logits_ref, tgt_ref, out_ref):
        j = pl.program_id(1)

        if accumulate:
            @pl.when(j == 0)
            def _():
                out_ref[...] = jnp.zeros_like(out_ref)

        logits = logits_ref[...].astype(jnp.float32)
        tgt = tgt_ref[...]
        w = w_ref[...].astype(jnp.float32)

        valid = tgt != ignore_index
        if mask_oob:
            # only emitted when the tile does not divide the pixel axis or when
            # redundant (clamped) p_split steps exist.
            if p_split > 1:
                blk = (pl.program_id(0) % p_split) * j_inner + j
            else:
                blk = j
            idx = jax.lax.broadcasted_iota(jnp.int32, tgt.shape, 1)
            valid = jnp.logical_and(valid, blk * tile + idx < total)

        loss = _focal_tile(logits, tgt, w, valid, gamma=gamma,
                           label_smoothing=label_smoothing,
                           num_classes=num_classes)

        if accumulate:
            # fold the whole tile into the tiny resident accumulator block
            out_ref[...] += jnp.sum(loss, keepdims=True)
        else:
            out_ref[...] = loss                      # dense per-element store

    return kernel


# ---------------------------------------------------------------------------
# Pure-JAX reference (also the fallback for very large C).
# ---------------------------------------------------------------------------
def _focal_loss_ref(logits, target, weight, *, gamma, ignore_index, reduction,
                    label_smoothing):
    C = logits.shape[1]
    logits = logits.astype(jnp.float32)
    weight = jnp.asarray(weight, jnp.float32)
    logp = jax.nn.log_softmax(logits, axis=1)
    valid = target != ignore_index
    t_safe = jnp.where(valid, target, 0).astype(jnp.int32)
    logp_t = jnp.take_along_axis(logp, t_safe[:, None], axis=1)[:, 0]
    w_t = weight[t_safe]
    nll = -w_t * logp_t
    if label_smoothing > 0.0:
        wshape = (1, C) + (1,) * (logits.ndim - 2)
        smooth = -jnp.sum(weight.reshape(wshape) * logp, axis=1) / C
        ce = (1.0 - label_smoothing) * nll + label_smoothing * smooth
    else:
        ce = nll
    ce = jnp.where(valid, ce, 0.0)
    pt = jnp.exp(-ce)
    loss = (1.0 - pt) ** gamma * ce
    if reduction == 'mean':
        return loss.mean()
    if reduction == 'sum':
        return loss.sum()
    return loss


# ---------------------------------------------------------------------------
# Wrapper.
# ---------------------------------------------------------------------------
def focal_loss_pallas(logits, target, weight, *, gamma=2.0, ignore_index=-100,
                      reduction='mean', label_smoothing=0.0,
                      block_rows=None, block_lanes=None):
    """logits: (N, C, *spatial) float; target: (N, *spatial) int; weight: (C,)."""
    if reduction not in ('none', 'mean', 'sum'):
        raise ValueError(f"unknown reduction: {reduction!r}")

    N, C = int(logits.shape[0]), int(logits.shape[1])
    spatial = tuple(int(s) for s in logits.shape[2:])
    HW = int(math.prod(spatial))
    itemsize = int(np.dtype(logits.dtype).itemsize)

    _, vmem_limit = _vmem_budget()
    budget = (vmem_limit * 3) // 4          # leave headroom for compiler scratch

    use_3d = (HW >= 128) and (HW % 128 == 0)
    w_f32 = jnp.asarray(weight, dtype=jnp.float32)

    if use_3d:
        # ---- 3-D (C, SB, 128) tiles: free reshape of NCHW --------------------
        S = HW // 128
        # bytes per sublane-row of one block: double-buffered logits / targets /
        # output plus ~6 live f32 (C, sb, 128) temporaries inside the kernel.
        per_row = 128 * (C * (2 * itemsize + 6 * 4) + (2 + 2 + 6) * 4)
        if per_row * min(8, S) > budget:
            # TODO(synk): tile the class axis with an online logsumexp for very
            # large C; fall back to plain JAX for now.
            return _focal_loss_ref(logits, target, weight, gamma=gamma,
                                   ignore_index=ignore_index,
                                   reduction=reduction,
                                   label_smoothing=label_smoothing)
        sb = budget // per_row if block_rows is None else int(block_rows)
        if sb >= S:
            sb = S
        else:
            sb = max(8, (sb // 8) * 8)
        j_total = -(-S // sb)
        tile, total = sb, S

        logits_r = logits.reshape(N, C, S, 128)
        tgt_r = target.reshape(N, 1, S, 128).astype(jnp.int32)
        w_r = w_f32.reshape(C, 1, 1)
    else:
        # ---- 2-D (C, TM) fallback (HW not a multiple of 128) -----------------
        per_lane = C * (2 * itemsize + 6 * 4) + (2 + 2 + 6) * 4
        if per_lane * min(128, HW) > budget:
            # TODO(synk): class-axis tiling for very large C.
            return _focal_loss_ref(logits, target, weight, gamma=gamma,
                                   ignore_index=ignore_index,
                                   reduction=reduction,
                                   label_smoothing=label_smoothing)
        tm = budget // per_lane if block_lanes is None else int(block_lanes)
        if tm >= HW:
            tm = HW
        else:
            tm = max(128, (tm // 128) * 128)
        j_total = -(-HW // tm)
        tile, total = tm, HW

        logits_r = logits.reshape(N, C, HW)
        tgt_r = target.reshape(N, 1, HW).astype(jnp.int32)
        w_r = w_f32.reshape(C, 1)

    # --------------------------- reduction == 'none' --------------------------
    if reduction == 'none':
        mask_oob = (total % tile) != 0
        kernel = _make_kernel(gamma=gamma, ignore_index=ignore_index,
                              label_smoothing=label_smoothing, num_classes=C,
                              tile=tile, total=total, p_split=1,
                              j_inner=j_total, mask_oob=mask_oob,
                              accumulate=False)
        if use_3d:
            in_specs = [pl.BlockSpec((C, 1, 1), lambda n, j: (0, 0, 0)),
                        pl.BlockSpec((None, C, tile, 128),
                                     lambda n, j: (n, 0, j, 0)),
                        pl.BlockSpec((None, 1, tile, 128),
                                     lambda n, j: (n, 0, j, 0))]
            out_spec = pl.BlockSpec((None, 1, tile, 128),
                                    lambda n, j: (n, 0, j, 0))
            out_shape = jax.ShapeDtypeStruct((N, 1, total, 128), jnp.float32)
        else:
            in_specs = [pl.BlockSpec((C, 1), lambda n, j: (0, 0)),
                        pl.BlockSpec((None, C, tile), lambda n, j: (n, 0, j)),
                        pl.BlockSpec((None, 1, tile), lambda n, j: (n, 0, j))]
            out_spec = pl.BlockSpec((None, 1, tile), lambda n, j: (n, 0, j))
            out_shape = jax.ShapeDtypeStruct((N, 1, HW), jnp.float32)

        out = pl.pallas_call(
            kernel, out_shape=out_shape,
            grid_spec=pltpu.PrefetchScalarGridSpec(
                num_scalar_prefetch=0, grid=(N, j_total),
                in_specs=in_specs, out_specs=out_spec),
            compiler_params=pltpu.CompilerParams(
                dimension_semantics=("parallel", "parallel"),
                vmem_limit_bytes=vmem_limit),
        )(w_r, logits_r, tgt_r)
        return out.reshape(target.shape)

    # ------------------------ reduction in ('mean','sum') ---------------------
    # never materialize the per-element loss in HBM; only split pixels across
    # the leading parallel axis when a second TensorCore exists and the batch
    # axis alone cannot feed it.
    ncores = _num_tensorcores()
    p_split = 2 if (ncores >= 2 and (N % 2 == 1) and j_total >= 2) else 1
    j_inner = -(-j_total // p_split)
    mask_oob = (p_split > 1) or ((total % tile) != 0)

    kernel = _make_kernel(gamma=gamma, ignore_index=ignore_index,
                          label_smoothing=label_smoothing, num_classes=C,
                          tile=tile, total=total, p_split=p_split,
                          j_inner=j_inner, mask_oob=mask_oob, accumulate=True)

    if use_3d:
        if p_split == 1:
            lmap = lambda o, j: (o, 0, j, 0)
        else:
            def lmap(o, j):
                # clamp: redundant trailing steps re-read the last real block;
                # their contribution is masked to zero in-kernel.
                blk = jnp.minimum((o % p_split) * j_inner + j, j_total - 1)
                return (o // p_split, 0, blk, 0)
        in_specs = [pl.BlockSpec((C, 1, 1), lambda o, j: (0, 0, 0)),
                    pl.BlockSpec((None, C, tile, 128), lmap),
                    pl.BlockSpec((None, 1, tile, 128), lmap)]
        out_spec = pl.BlockSpec((None, 1, 1, 1), lambda o, j: (o, 0, 0, 0))
        out_shape = jax.ShapeDtypeStruct((N * p_split, 1, 1, 1), jnp.float32)
    else:
        if p_split == 1:
            lmap = lambda o, j: (o, 0, j)
        else:
            def lmap(o, j):
                blk = jnp.minimum((o % p_split) * j_inner + j, j_total - 1)
                return (o // p_split, 0, blk)
        in_specs = [pl.BlockSpec((C, 1), lambda o, j: (0, 0)),
                    pl.BlockSpec((None, C, tile), lmap),
                    pl.BlockSpec((None, 1, tile), lmap)]
        out_spec = pl.BlockSpec((None, 1, 1), lambda o, j: (o, 0, 0))
        out_shape = jax.ShapeDtypeStruct((N * p_split, 1, 1), jnp.float32)

    psum = pl.pallas_call(
        kernel, out_shape=out_shape,
        grid_spec=pltpu.PrefetchScalarGridSpec(
            num_scalar_prefetch=0, grid=(N * p_split, j_inner),
            in_specs=in_specs, out_specs=out_spec),
        compiler_params=pltpu.CompilerParams(
            dimension_semantics=("parallel", "arbitrary"),
            vmem_limit_bytes=vmem_limit),
    )(w_r, logits_r, tgt_r)

    total_loss = jnp.sum(psum)
    if reduction == 'mean':
        return total_loss / (N * HW)      # .mean() over ALL elements (incl. ignored)
    return total_loss


if __name__ == "__main__":
    key = jax.random.PRNGKey(0)
    keys = jax.random.split(key, 8)

    weight2 = jnp.array([1.0, 10.0], dtype=jnp.float32)   # module __init__ default

    # 1) default config (mean, gamma=2), 3-D sublane-dense path (HW % 128 == 0)
    N, C, H, W = 2, 2, 16, 16
    logits = jax.random.normal(keys[0], (N, C, H, W), dtype=jnp.float32)
    target = jax.random.randint(keys[1], (N, H, W), 0, C, dtype=jnp.int32)
    target = jnp.where(jax.random.uniform(keys[2], (N, H, W)) < 0.1,
                       jnp.int32(-100), target)            # exercise ignore_index
    got = jax.block_until_ready(focal_loss_pallas(logits, target, weight2))
    ref = _focal_loss_ref(logits, target, weight2, gamma=2.0, ignore_index=-100,
                          reduction='mean', label_smoothing=0.0)
    np.testing.assert_allclose(np.asarray(got), np.asarray(ref),
                               rtol=1e-5, atol=1e-5)

    # 2) 'sum' with bf16 logits and HW NOT a multiple of 128 (2-D tail path)
    H2, W2 = 9, 16                                          # HW = 144
    logits2 = jax.random.normal(keys[3], (N, C, H2, W2), dtype=jnp.float32)
    target2 = jax.random.randint(keys[4], (N, H2, W2), 0, C, dtype=jnp.int32)
    target2 = jnp.where(jax.random.uniform(keys[5], (N, H2, W2)) < 0.1,
                        jnp.int32(-100), target2)
    got2 = jax.block_until_ready(
        focal_loss_pallas(logits2.astype(jnp.bfloat16), target2, weight2,
                          reduction='sum'))
    ref2 = _focal_loss_ref(logits2.astype(jnp.bfloat16).astype(jnp.float32),
                           target2, weight2, gamma=2.0, ignore_index=-100,
                           reduction='sum', label_smoothing=0.0)
    np.testing.assert_allclose(np.asarray(got2), np.asarray(ref2),
                               rtol=2e-5, atol=1e-3)

    # 3) reduction='none' + label smoothing (dense per-element output stores)
    got3 = jax.block_until_ready(
        focal_loss_pallas(logits, target, weight2, reduction='none',
                          label_smoothing=0.1))
    ref3 = _focal_loss_ref(logits, target, weight2, gamma=2.0, ignore_index=-100,
                           reduction='none', label_smoothing=0.1)
    np.testing.assert_allclose(np.asarray(got3), np.asarray(ref3),
                               rtol=1e-5, atol=1e-5)

    # 4) multi-block accumulation: N=1 (odd -> optional megacore split), C=3,
    #    forced small block_rows so the j-axis accumulator path is exercised.
    C4, H4, W4 = 3, 16, 128                                 # HW = 2048 -> S = 16
    weight3 = jnp.array([1.0, 2.0, 0.5], dtype=jnp.float32)
    logits4 = jax.random.normal(keys[6], (1, C4, H4, W4), dtype=jnp.float32)
    target4 = jax.random.randint(keys[7], (1, H4, W4), 0, C4, dtype=jnp.int32)
    got4 = jax.block_until_ready(
        focal_loss_pallas(logits4, target4, weight3, reduction='mean',
                          block_rows=8))
    ref4 = _focal_loss_ref(logits4, target4, weight3, gamma=2.0,
                           ignore_index=-100, reduction='mean',
                           label_smoothing=0.0)
    np.testing.assert_allclose(np.asarray(got4), np.asarray(ref4),
                               rtol=1e-5, atol=1e-5)

    print("KERNEL_OK")
</pallas_src>

<mosaic_0001>
module attributes {stable_mosaic.version = 11 : i64} {
  func.func @kernel(%arg0: i32, %arg1: i32, %arg2: memref<2x1x1xf32, #tpu.memory_space<vmem>>, %arg3: memref<1x2x2x128xf32, #tpu.memory_space<vmem>>, %arg4: memref<1x1x2x128xi32, #tpu.memory_space<vmem>>, %arg5: memref<1x1x1x1xf32, #tpu.memory_space<vmem>>) attributes {dimension_semantics = [#tpu.dimension_semantics<parallel>, #tpu.dimension_semantics<arbitrary>], iteration_bounds = array<i64: 2, 1>, scalar_prefetch = 0 : i64, scratch_operands = 0 : i64, tpu.core_type = #tpu.core_type<tc>, window_params = [{pipeline_mode = #tpu.pipeline_mode<synchronous>, transform_indices = @transform_0, window_bounds = array<i64: 2, 1, 1>}, {transform_indices = @transform_1, window_bounds = array<i64: 1, 2, 2, 128>}, {transform_indices = @transform_2, window_bounds = array<i64: 1, 1, 2, 128>}, {transform_indices = @transform_3, window_bounds = array<i64: 1, 1, 1, 1>}]} {
    %c0_i32 = arith.constant 0 : i32
    %0 = arith.cmpi eq, %arg1, %c0_i32 : i32
    %1 = arith.extui %0 : i1 to i32
    %c0_i32_0 = arith.constant 0 : i32
    %2 = arith.cmpi ne, %1, %c0_i32_0 : i32
    scf.if %2 {
      %cst_28 = arith.constant 0.000000e+00 : f32
      %54 = vector.broadcast %cst_28 : f32 to vector<1x1x1xf32>
      %c0_29 = arith.constant 0 : index
      %c0_30 = arith.constant 0 : index
      %c0_31 = arith.constant 0 : index
      %c0_32 = arith.constant 0 : index
      %55 = vector.load %arg5[%c0_29, %c0_30, %c0_31, %c0_32] : memref<1x1x1x1xf32, #tpu.memory_space<vmem>>, vector<1x1x1x1xf32>
      %56 = vector.shape_cast %55 : vector<1x1x1x1xf32> to vector<1x1x1xf32>
      %57 = vector.shape_cast %54 : vector<1x1x1xf32> to vector<1x1x1x1xf32>
      tpu.vector_store %arg5[%c0_29, %c0_30, %c0_31, %c0_32], %57 {strides = array<i32>} : memref<1x1x1x1xf32, #tpu.memory_space<vmem>>, vector<1x1x1x1xf32>,
    } else {
    }
    %c0 = arith.constant 0 : index
    %c0_1 = arith.constant 0 : index
    %c0_2 = arith.constant 0 : index
    %c0_3 = arith.constant 0 : index
    %3 = vector.load %arg3[%c0, %c0_1, %c0_2, %c0_3] : memref<1x2x2x128xf32, #tpu.memory_space<vmem>>, vector<1x2x2x128xf32>
    %4 = vector.shape_cast %3 : vector<1x2x2x128xf32> to vector<2x2x128xf32>
    %c0_4 = arith.constant 0 : index
    %c0_5 = arith.constant 0 : index
    %c0_6 = arith.constant 0 : index
    %c0_7 = arith.constant 0 : index
    %5 = vector.load %arg4[%c0_4, %c0_5, %c0_6, %c0_7] : memref<1x1x2x128xi32, #tpu.memory_space<vmem>>, vector<1x1x2x128xi32>
    %6 = vector.shape_cast %5 : vector<1x1x2x128xi32> to vector<1x2x128xi32>
    %c0_8 = arith.constant 0 : index
    %c0_9 = arith.constant 0 : index
    %c0_10 = arith.constant 0 : index
    %7 = vector.load %arg2[%c0_8, %c0_9, %c0_10] : memref<2x1x1xf32, #tpu.memory_space<vmem>>, vector<2x1x1xf32>
    %c-100_i32 = arith.constant -100 : i32
    %8 = vector.broadcast %c-100_i32 : i32 to vector<1x2x128xi32>
    %9 = arith.cmpi ne, %6, %8 : vector<1x2x128xi32>
    %cst = arith.constant dense<0xFF800000> : vector<2x128xf32>
    %10 = vector.multi_reduction <maximumf>, %4, %cst [0] : vector<2x2x128xf32> to vector<2x128xf32>
    %11 = vector.shape_cast %10 : vector<2x128xf32> to vector<1x2x128xf32>
    %12 = vector.broadcast %11 : vector<1x2x128xf32> to vector<2x2x128xf32>
    %13 = arith.subf %4, %12 : vector<2x2x128xf32>
    %14 = math.exp %13 : vector<2x2x128xf32>
    %cst_11 = arith.constant dense<0.000000e+00> : vector<2x128xf32>
    %15 = vector.multi_reduction <add>, %14, %cst_11 [0] : vector<2x2x128xf32> to vector<2x128xf32>
    %16 = vector.shape_cast %15 : vector<2x128xf32> to vector<1x2x128xf32>
    %17 = math.log %16 : vector<1x2x128xf32>
    %18 = arith.addf %11, %17 : vector<1x2x128xf32>
    %19 = vector.broadcast %18 : vector<1x2x128xf32> to vector<2x2x128xf32>
    %20 = arith.subf %4, %19 : vector<2x2x128xf32>
    %21 = vector.broadcast %7 : vector<2x1x1xf32> to vector<2x2x128xf32>
    %22 = arith.mulf %21, %20 : vector<2x2x128xf32>
    %23 = tpu.iota {dimensions = array<i32: 0>} : vector<2x2x128xi32>
    %24 = vector.broadcast %6 : vector<1x2x128xi32> to vector<2x2x128xi32>
    %25 = arith.cmpi eq, %23, %24 : vector<2x2x128xi32>
    %cst_12 = arith.constant 0.000000e+00 : f32
    %26 = vector.broadcast %cst_12 : f32 to vector<2x2x128xf32>
    %27 = arith.select %25, %22, %26 : vector<2x2x128xi1>, vector<2x2x128xf32>
    %cst_13 = arith.constant dense<0.000000e+00> : vector<2x128xf32>
    %28 = vector.multi_reduction <add>, %27, %cst_13 [0] : vector<2x2x128xf32> to vector<2x128xf32>
    %29 = vector.shape_cast %28 : vector<2x128xf32> to vector<1x2x128xf32>
    %cst_14 = arith.constant 0.000000e+00 : f32
    %30 = vector.broadcast %cst_14 : f32 to vector<1x2x128xf32>
    %31 = arith.subf %30, %29 : vector<1x2x128xf32>
    %cst_15 = arith.constant 0.000000e+00 : f32
    %32 = vector.broadcast %cst_15 : f32 to vector<1x2x128xf32>
    %33 = arith.select %9, %31, %32 : vector<1x2x128xi1>, vector<1x2x128xf32>
    %cst_16 = arith.constant 0.000000e+00 : f32
    %34 = vector.broadcast %cst_16 : f32 to vector<1x2x128xf32>
    %35 = arith.subf %34, %33 : vector<1x2x128xf32>
    %36 = math.exp %35 : vector<1x2x128xf32>
    %cst_17 = arith.constant 1.000000e+00 : f32
    %37 = vector.broadcast %cst_17 : f32 to vector<1x2x128xf32>
    %38 = arith.subf %37, %36 : vector<1x2x128xf32>
    %cst_18 = arith.constant 0.000000e+00 : f32
    %39 = vector.broadcast %cst_18 : f32 to vector<1x2x128xf32>
    %40 = arith.maximumf %38, %39 : vector<1x2x128xf32>
    %41 = arith.mulf %40, %40 : vector<1x2x128xf32>
    %42 = arith.mulf %41, %33 : vector<1x2x128xf32>
    %c0_19 = arith.constant 0 : index
    %c0_20 = arith.constant 0 : index
    %c0_21 = arith.constant 0 : index
    %c0_22 = arith.constant 0 : index
    %43 = vector.load %arg5[%c0_19, %c0_20, %c0_21, %c0_22] : memref<1x1x1x1xf32, #tpu.memory_space<vmem>>, vector<1x1x1x1xf32>
    %44 = vector.shape_cast %43 : vector<1x1x1x1xf32> to vector<1x1x1xf32>
    %45 = vector.shape_cast %42 : vector<1x2x128xf32> to vector<1x1x2x128xf32>
    %cst_23 = arith.constant dense<0.000000e+00> : vector<1xf32>
    %46 = vector.multi_reduction <add>, %45, %cst_23 [1, 2, 3] : vector<1x1x2x128xf32> to vector<1xf32>
    %47 = vector.shape_cast %46 : vector<1xf32> to vector<1x1x1x1xf32>
    %48 = vector.extract %47[0, 0, 0, 0] : f32 from vector<1x1x1x1xf32>
    %49 = vector.broadcast %48 : f32 to vector<1x1x1xf32>
    %50 = arith.addf %44, %49 : vector<1x1x1xf32>
    %c0_24 = arith.constant 0 : index
    %c0_25 = arith.constant 0 : index
    %c0_26 = arith.constant 0 : index
    %c0_27 = arith.constant 0 : index
    %51 = vector.load %arg5[%c0_24, %c0_25, %c0_26, %c0_27] : memref<1x1x1x1xf32, #tpu.memory_space<vmem>>, vector<1x1x1x1xf32>
    %52 = vector.shape_cast %51 : vector<1x1x1x1xf32> to vector<1x1x1xf32>
    %53 = vector.shape_cast %50 : vector<1x1x1xf32> to vector<1x1x1x1xf32>
    tpu.vector_store %arg5[%c0_24, %c0_25, %c0_26, %c0_27], %53 {strides = array<i32>} : memref<1x1x1x1xf32, #tpu.memory_space<vmem>>, vector<1x1x1x1xf32>,
    return
  }
  func.func @transform_0(%arg0: i32, %arg1: i32) -> (i32, i32, i32) {
    %c0_i32 = arith.constant 0 : i32
    %c0_i32_0 = arith.constant 0 : i32
    %c0_i32_1 = arith.constant 0 : i32
    %c0_i32_2 = arith.constant 0 : i32
    return %c0_i32, %c0_i32_0, %c0_i32_1 : i32, i32, i32
  }
  func.func @transform_1(%arg0: i32, %arg1: i32) -> (i32, i32, i32, i32) {
    %c0_i32 = arith.constant 0 : i32
    %c0_i32_0 = arith.constant 0 : i32
    %c0_i32_1 = arith.constant 0 : i32
    return %arg0, %c0_i32, %arg1, %c0_i32_0 : i32, i32, i32, i32
  }
  func.func @transform_2(%arg0: i32, %arg1: i32) -> (i32, i32, i32, i32) {
    %c0_i32 = arith.constant 0 : i32
    %c0_i32_0 = arith.constant 0 : i32
    %c0_i32_1 = arith.constant 0 : i32
    return %arg0, %c0_i32, %arg1, %c0_i32_0 : i32, i32, i32, i32
  }
  func.func @transform_3(%arg0: i32, %arg1: i32) -> (i32, i32, i32, i32) {
    %c0_i32 = arith.constant 0 : i32
    %c0_i32_0 = arith.constant 0 : i32
    %c0_i32_1 = arith.constant 0 : i32
    %c0_i32_2 = arith.constant 0 : i32
    return %arg0, %c0_i32, %c0_i32_0, %c0_i32_1 : i32, i32, i32, i32
  }
}

</mosaic_0001>

<llo_original>
// kernel: tpu_custom_call.1
$region0: #{tpu_custom_call.1}
  #allocation0 [shape = 'u32[]', space=smem, size = 0x4, offset = 0x4, fixed_abs, tag = 'smem constant byte address 0x4 - core index']
  #allocation1 [shape = 'u32[144,128]{1,0:T(1,128)}', space=vmem, size = 0x12000, scoped, tag = 'internal scratch']
  %s0 = inlined_call_operand.vmem [shape: f32[2,1,1], index: 0, kind: input, shape index: {}]
  %s1 = inlined_call_operand.hbm [shape: f32[2,2,2,128], index: 1, kind: input, shape index: {}]
  %s2 = inlined_call_operand.vmem [shape: s32[2,1,2,128], index: 2, kind: input, shape index: {}]
  %s3 = inlined_call_operand.vmem [shape: f32[2,1,1,1], index: 3, kind: output, shape index: {}]
  %s4 = sld [smem:[#allocation0]]
  $region53: #{tpu_custom_call.1} parent=0
    _
  %s6 = ssub.s32 1, %s4
  %s7 = scalar_select 0, %s6, %s4
  $region1: #{tpu_custom_call.1} parent=0
    #allocation2 [shape = 'u8[4096]{0}', space=vmem, size = 0x1000, scoped, tag = 'input window, operand 1']
    #allocation3 [shape = 's32[2]{0}', space=sflag, size = 0x8, scoped, tag = 'scoped memory for tpu_custom_call.1']
    %8 = vsyncpa [#allocation3], 0
    %s9 = scalar_lea.sflag [#allocation3], 1
    %10 = vsyncpa %s9, 0
    loop: start=0, step=1, limit=4
    $region2: #{tpu_custom_call.1} parent=1 // loop_pre_header
      _
    $region3: #{tpu_custom_call.1} parent=1 // loop_header
      %s12 = sphi 0, %s16
      %p13 = scmp.ge.s32.totalorder %s12, 4
      %s19 = sphi 0, %s31
      %s20 = sphi 0, %s27
      %s21 = sphi 0, %s19
      %s22 = sphi 0, %s20
      %s23 = sphi 0, %s21
      %s24 = sphi 0, %s22
      %s32 = sphi 0, %s32
      %s34 = sphi 0, %s32
      %s35 = sphi 0, %s34
      %s49 = sphi 0, %s35
      %s57 = sphi 0, %s59
      %s60 = sphi 0, %s57
      %s61 = sphi 0, %s60
      %s77 = sphi 0, %s61
      %s85 = sphi 0, %s87
      %s88 = sphi 0, %s85
      %s89 = sphi 0, %s88
      %s105 = sphi 0, %s89
      %s111 = sphi 0, %s113
      %s114 = sphi 0, %s111
      %s115 = sphi 0, %s114
      %s131 = sphi 0, %s115
    $region4: #{tpu_custom_call.1} parent=1 // loop_header_branch
      %15 = sbr.rel (%p13) target = $region8
    $region5: #{tpu_custom_call.1} parent=1 // loop_body
      %s17 = ssub.s32 %s12, 1
      %s18 = ssub.s32 %s12, 2
      %s25 = sadd.s32 1, %s20
      %p26 = scmp.ge.s32.totalorder %s25, 1
      %s27 = scalar_select %p26, 0, %s25
      %s28 = sadd.s32 1, %s19
      %s29 = scalar_select %p26, %s28, %s19
      %p30 = scmp.ge.s32.totalorder %s29, 2
      %s31 = scalar_select %p30, 0, %s29
      %s33 = sadd.s32 %s32, 1
      %p36 = scmp.eq.s32.totalorder %s12, 1
      %p37 = scmp.ne.s32.totalorder %s32, %s34
      %p38 = scmp.eq.s32.totalorder %s12, 0
      %p39 = por %p37, %p38
      %p40 = scmp.ne.s32.totalorder %s32, %s34
      %p41 = scmp.eq.s32.totalorder %s17, 1
      %p42 = por %p40, %p41
      %p43 = scmp.ne.s32.totalorder %s34, %s35
      %p44 = scmp.eq.s32.totalorder %s17, 0
      %p45 = por %p43, %p44
      %p46 = scmp.ne.s32.totalorder %s34, %s35
      %p47 = scmp.eq.s32.totalorder %s18, 1
      %p48 = por %p46, %p47
      %p50 = scmp.ne.s32.totalorder %s35, %s49
      %p51 = scmp.eq.s32.totalorder %s18, 0
      %p52 = por %p50, %p51
      %s53 = ssub.s32 %s19, %s31
      %s54 = ssub.s32 %s20, %s27
      %s55 = sor.u32 %s53, %s54
      %p56 = scmp.eq.s32.totalorder %s55, 0
      %s58 = sadd.s32 %s57, 1
      %s59 = scalar_select %p56, %s57, %s58
      %p62 = pneg %p56
      %p63 = scmp.eq.s32.totalorder %s12, 1
      %p64 = por %p62, %p63
      %p65 = scmp.ne.s32.totalorder %s57, %s60
      %p66 = scmp.eq.s32.totalorder %s12, 0
      %p67 = por %p65, %p66
      %p68 = scmp.ne.s32.totalorder %s57, %s60
      %p69 = scmp.eq.s32.totalorder %s17, 1
      %p70 = por %p68, %p69
      %p71 = scmp.ne.s32.totalorder %s60, %s61
      %p72 = scmp.eq.s32.totalorder %s17, 0
      %p73 = por %p71, %p72
      %p74 = scmp.ne.s32.totalorder %s60, %s61
      %p75 = scmp.eq.s32.totalorder %s18, 1
      %p76 = por %p74, %p75
      %p78 = scmp.ne.s32.totalorder %s61, %s77
      %p79 = scmp.eq.s32.totalorder %s18, 0
      %p80 = por %p78, %p79
      %s81 = ssub.s32 %s19, %s31
      %s82 = ssub.s32 %s20, %s27
      %s83 = sor.u32 %s81, %s82
      %p84 = scmp.eq.s32.totalorder %s83, 0
      %s86 = sadd.s32 %s85, 1
      %s87 = scalar_select %p84, %s85, %s86
      %p90 = pneg %p84
      %p91 = scmp.eq.s32.totalorder %s12, 1
      %p92 = por %p90, %p91
      %p93 = scmp.ne.s32.totalorder %s85, %s88
      %p94 = scmp.eq.s32.totalorder %s12, 0
      %p95 = por %p93, %p94
      %p96 = scmp.ne.s32.totalorder %s85, %s88
      %p97 = scmp.eq.s32.totalorder %s17, 1
      %p98 = por %p96, %p97
      %p99 = scmp.ne.s32.totalorder %s88, %s89
      %p100 = scmp.eq.s32.totalorder %s17, 0
      %p101 = por %p99, %p100
      %p102 = scmp.ne.s32.totalorder %s88, %s89
      %p103 = scmp.eq.s32.totalorder %s18, 1
      %p104 = por %p102, %p103
      %p106 = scmp.ne.s32.totalorder %s89, %s105
      %p107 = scmp.eq.s32.totalorder %s18, 0
      %p108 = por %p106, %p107
      %s109 = ssub.s32 %s19, %s31
      %p110 = scmp.eq.s32.totalorder %s109, 0
      %s112 = sadd.s32 %s111, 1
      %s113 = scalar_select %p110, %s111, %s112
      %p116 = pneg %p110
      %p117 = scmp.eq.s32.totalorder %s12, 1
      %p118 = por %p116, %p117
      %p119 = scmp.ne.s32.totalorder %s111, %s114
      %p120 = scmp.eq.s32.totalorder %s12, 0
      %p121 = por %p119, %p120
      %p122 = scmp.ne.s32.totalorder %s111, %s114
      %p123 = scmp.eq.s32.totalorder %s17, 1
      %p124 = por %p122, %p123
      %p125 = scmp.ne.s32.totalorder %s114, %s115
      %p126 = scmp.eq.s32.totalorder %s17, 0
      %p127 = por %p125, %p126
      %p128 = scmp.ne.s32.totalorder %s114, %s115
      %p129 = scmp.eq.s32.totalorder %s18, 1
      %p130 = por %p128, %p129
      %p132 = scmp.ne.s32.totalorder %s115, %s131
      %p133 = scmp.eq.s32.totalorder %s18, 0
      %p134 = por %p132, %p133
      %p135 = scmp.le.s32.totalorder 1, %s12
      %p136 = scmp.lt.s32.totalorder %s12, 3
      %p137 = pnand %p135, %p136
      %p138 = pneg %p137
      // Predicated region
      $region9: #{tpu_custom_call.1} parent=5 // pred_check
        _
      $region10: #{tpu_custom_call.1} parent=5 // pred_check_branch
        %140 = sbr.rel (%p137) target = $region12
      $region11: #{tpu_custom_call.1} parent=5 // pred_region
        %s141 = ssub.s32 %s12, 1
        // Predicated region
        $region13: #{tpu_custom_call.1} parent=11 // pred_check
          %p142 = pneg %p45
        $region14: #{tpu_custom_call.1} parent=11 // pred_check_branch
          %144 = sbr.rel (%p142) target = $region16
        $region15: #{tpu_custom_call.1} parent=11 // pred_region
          _
        $region16: #{tpu_custom_call.1} parent=11 // pred_fallthru
          _
      $region12: #{tpu_custom_call.1} parent=5 // pred_fallthru
        _
      %p145 = scmp.lt.s32.totalorder %s12, 2
      // Predicated region
      $region17: #{tpu_custom_call.1} parent=5 // pred_check
        %p146 = pneg %p145
      $region18: #{tpu_custom_call.1} parent=5 // pred_check_branch
        %148 = sbr.rel (%p146) target = $region20
      $region19: #{tpu_custom_call.1} parent=5 // pred_region
        // Predicated region
        $region21: #{tpu_custom_call.1} parent=19 // pred_check
          %p149 = pneg %p67
        $region22: #{tpu_custom_call.1} parent=19 // pred_check_branch
          %151 = sbr.rel (%p149) target = $region24
        $region23: #{tpu_custom_call.1} parent=19 // pred_region
          %s152 = sand.u32 %s57, 1
          %s153 = scalar_lea.sflag [#allocation3], %s152
          %s154 = sand.u32 %s57, 1
          %s155 = smul.addr %s154, 4
          %s156 = scalar_lea.vmem [#allocation2], %s155
          %s158 = ssub.s32 64, 64
          %159 = vsyncadd %s153, %s158
          %s160 = smul.addr %s19, 2
          %s161 = sadd.s32 %s20, %s160
          %s162 = smul.addr %s161, 32
          %s163 = scalar_lea.hbm %s1, %s162
          %s164 = sshll.u32 %s156, 4
          %s165 = int_to_ptr.vmem [resolvable:$true] %s164
          %170 = dma.hbm_to_vmem [thread:$0]  %s163, 64, %s165, %s153, 32, 32, 2
        $region24: #{tpu_custom_call.1} parent=19 // pred_fallthru
          _
        // Predicated region
        $region25: #{tpu_custom_call.1} parent=19 // pred_check
          %p171 = pneg %p95
        $region26: #{tpu_custom_call.1} parent=19 // pred_check_branch
          %173 = sbr.rel (%p171) target = $region28
        $region27: #{tpu_custom_call.1} parent=19 // pred_region
          %p174 = scmp.lt.s32.totalorder %s19, 1
          %s175 = scalar_select %p174, %s19, 1
          %p176 = scmp.lt.s32.totalorder %s20, 0
          %s177 = scalar_select %p176, %s20, 0
          %s178 = sadd.s32 %s177, %s175
          %s179 = smul.addr %s178, 2
          %s180 = scalar_lea.vmem %s2, %s179
        $region28: #{tpu_custom_call.1} parent=19 // pred_fallthru
          _
      $region20: #{tpu_custom_call.1} parent=5 // pred_fallthru
        _
      %p181 = scmp.le.s32.totalorder 1, %s12
      %p182 = scmp.lt.s32.totalorder %s12, 3
      %p183 = pnand %p181, %p182
      %p184 = pneg %p183
      // Predicated region
      $region29: #{tpu_custom_call.1} parent=5 // pred_check
        _
      $region30: #{tpu_custom_call.1} parent=5 // pred_check_branch
        %186 = sbr.rel (%p183) target = $region32
      $region31: #{tpu_custom_call.1} parent=5 // pred_region
        %s187 = ssub.s32 %s12, 1
        %s188 = sand.u32 %s60, 1
        %s189 = scalar_lea.sflag [#allocation3], %s188
        %s190 = sand.u32 %s60, 1
        %s191 = smul.addr %s190, 4
        %s192 = scalar_lea.vmem [#allocation2], %s191
        // Predicated region
        $region33: #{tpu_custom_call.1} parent=31 // pred_check
          %p193 = pneg %p73
        $region34: #{tpu_custom_call.1} parent=31 // pred_check_branch
          %195 = sbr.rel (%p193) target = $region36
        $region35: #{tpu_custom_call.1} parent=31 // pred_region
          %196 = dma.done %s189, 64
        $region36: #{tpu_custom_call.1} parent=31 // pred_fallthru
          _
        %p197 = pneg %p45
        %p198 = pneg %p42
        %s199 = sand.u32 %s60, 1
        %s200 = scalar_lea.sflag [#allocation3], %s199
        %s201 = sand.u32 %s60, 1
        %s202 = smul.addr %s201, 4
        %s203 = scalar_lea.vmem [#allocation2], %s202
        %p204 = pneg %p73
        %p205 = pneg %p70
        %p206 = scmp.lt.s32.totalorder %s21, 1
        %s207 = scalar_select %p206, %s21, 1
        %p208 = scmp.lt.s32.totalorder %s22, 0
        %s209 = scalar_select %p208, %s22, 0
        %s210 = sadd.s32 %s209, %s207
        %s211 = smul.addr %s210, 2
        %s212 = scalar_lea.vmem %s2, %s211
        %p213 = pneg %p101
        %p214 = pneg %p98
        %p215 = pneg %p127
        %p216 = pneg %p124
        %p217 = scmp.lt.s32.totalorder %s21, 1
        %s218 = scalar_select %p217, %s21, 1
        %s219 = scalar_lea.vmem %s3, %s218
        %p220 = scmp.lt.s32.totalorder %s21, 1
        %s221 = scalar_select %p220, %s21, 1
        %p222 = scmp.lt.s32.totalorder %s22, 0
        %s223 = scalar_select %p222, %s22, 0
        %s224 = sadd.s32 %s223, %s221
        %s225 = smul.addr %s224, 2
        %s226 = scalar_lea.vmem %s2, %s225
        %p227 = scmp.lt.s32.totalorder %s21, 1
        %s228 = scalar_select %p227, %s21, 1
        %s229 = scalar_lea.vmem %s3, %s228
        %p230 = scmp.eq.s32.totalorder %s22, 0
        // Predicated region
        $region37: #{tpu_custom_call.1} parent=31 // pred_check
          %p231 = pneg %p230
        $region38: #{tpu_custom_call.1} parent=31 // pred_check_branch
          %233 = sbr.rel (%p231) target = $region40
        $region39: #{tpu_custom_call.1} parent=31 // pred_region
          %vm234 = vcmask 0
          %235 = vst.msk [vmem:[%s229] sm:$0x1] %vm234, 0.0
        $region40: #{tpu_custom_call.1} parent=31 // pred_fallthru
          _
        %v236 = vld [vmem:[%s192] sm:$0x3]
        %v237 = vld [vmem:[%s192 + $0x2] sm:$0x3]
        %v238 = vld [vmem:[%s226] sm:$0x3]
        %v239 = vld [vmem:[%s0] sm:$0x1]
        %v240 = vld [vmem:[%s0 + $0x1] sm:$0x1]
        %vm241 = vcmp.ne.s32.totalorder %v238, 4294967196
        %vm242 = vcmask 1041408
        %v243 = vsel %vm242, %v236, -inf
        %v244 = vsel %vm242, %v237, -inf
        %v245 = vmax.f32 %v243, %v244
        %v246 = vsub.f32 %v236, %v245
        %v247 = vsub.f32 %v237, %v245
        %v248 = vmul.f32 %v246, 1.442695
        %v249 = vpow.pop %v248
        %v250 = vmul.f32 %v247, 1.442695
        %v251 = vpow.pop %v250
        %v252 = vsel %vm242, %v249, 0.0
        %v253 = vsel %vm242, %v251, 0.0
        %v254 = vadd.f32 %v252, %v253
        %v255 = vlog2.pop %v254
        %v256 = vmul.f32 %v255, 0.6931472
        %v257 = vadd.f32 %v245, %v256
        %v258 = vsub.f32 %v236, %v257
        %v259 = vsub.f32 %v237, %v257
        %v262 = vlaneseq
        %v263 = vshrl.u32 %v262, 7
        %v264 = vsub.s32 0, %v263
        %v265 = vrot.slane %v239, %v264
        %v266 = vlaneseq
        %v267 = vshrl.u32 %v266, 7
        %v268 = vsub.s32 0, %v267
        %v269 = vrot.slane %v240, %v268
        %270 = vset.pattern.permute.xlu0 0
        %271 = vperm.xlu0 %270, %v265
        %v272 = vpop.permute.xlu0 %271
        %274 = vset.pattern.permute.xlu0 0
        %275 = vperm.xlu0 %274, %v269
        %v276 = vpop.permute.xlu0 %275
        %v278 = vmul.f32 %v272, %v258
        %v279 = vmul.f32 %v276, %v259
        %vm280 = vcmp.eq.s32.totalorder %v238, 0
        %vm281 = vcmp.eq.s32.totalorder %v238, 1
        %v282 = vsel %vm280, %v278, 0.0
        %v283 = vsel %vm281, %v279, 0.0
        %v284 = vsel %vm242, %v282, 0.0
        %v285 = vsel %vm242, %v283, 0.0
        %v286 = vadd.f32 %v284, %v285
        %v287 = vsub.f32 0.0, %v286
        %v288 = vsel %vm241, %v287, 0.0
        %v289 = vsub.f32 0.0, %v288
        %v290 = vmul.f32 %v289, 1.442695
        %v291 = vpow.pop %v290
        %v292 = vsub.f32 1.0, %v291
        %v293 = vmax.f32 %v292, 0.0
        %v294 = vmul.f32 %v293, %v293
        %v295 = vmul.f32 %v294, %v288
        %v296 = vld [vmem:[%s229] sm:$0x1]
        %v297 = vsel %vm242, %v295, 0.0
        %298 = vadd.xlane.f32.xlu0 %v297
        %v299 = vpop.xlane.xlu0 %298
        %v300 = vrot.slane %v299, 4
        %v301 = vadd.f32 %v299, %v300
        %v302 = vrot.slane %v301, 2
        %v303 = vadd.f32 %v301, %v302
        %v304 = vrot.slane %v303, 1
        %v305 = vadd.f32 %v303, %v304
        %s306 = vtos %v305
        %v307 = vstv %s306
        %v308 = vadd.f32 %v296, %v307
        %vm309 = vcmask 0
        %310 = vst.msk [vmem:[%s229] sm:$0x1] %vm309, %v308
        %p311 = scmp.lt.s32.totalorder %s21, 1
        %s312 = scalar_select %p311, %s21, 1
        %s313 = scalar_lea.vmem %s3, %s312
        // Predicated region
        $region41: #{tpu_custom_call.1} parent=31 // pred_check
          %p314 = pneg %p124
        $region42: #{tpu_custom_call.1} parent=31 // pred_check_branch
          %316 = sbr.rel (%p314) target = $region44
        $region43: #{tpu_custom_call.1} parent=31 // pred_region
          _
        $region44: #{tpu_custom_call.1} parent=31 // pred_fallthru
          _
      $region32: #{tpu_custom_call.1} parent=5 // pred_fallthru
        _
      %p317 = scmp.le.s32.totalorder 2, %s12
      // Predicated region
      $region45: #{tpu_custom_call.1} parent=5 // pred_check
        %p318 = pneg %p317
      $region46: #{tpu_custom_call.1} parent=5 // pred_check_branch
        %320 = sbr.rel (%p318) target = $region48
      $region47: #{tpu_custom_call.1} parent=5 // pred_region
        %s321 = ssub.s32 %s12, 2
        // Predicated region
        $region49: #{tpu_custom_call.1} parent=47 // pred_check
          %p322 = pneg %p130
        $region50: #{tpu_custom_call.1} parent=47 // pred_check_branch
          %324 = sbr.rel (%p322) target = $region52
        $region51: #{tpu_custom_call.1} parent=47 // pred_region
          %p325 = scmp.lt.s32.totalorder %s23, 1
          %s326 = scalar_select %p325, %s23, 1
          %s327 = scalar_lea.vmem %s3, %s326
        $region52: #{tpu_custom_call.1} parent=47 // pred_fallthru
          _
      $region48: #{tpu_custom_call.1} parent=5 // pred_fallthru
        _
    $region6: #{tpu_custom_call.1} parent=1 // loop_footer
      %s16 = sadd.s32 1, %s12
    $region7: #{tpu_custom_call.1} parent=1 // loop_footer_branch
      %11 = sbr.rel target = $region3
    $region8: #{tpu_custom_call.1} parent=1 // loop_exit
      _
    %328 = vsyncpa [#allocation3], 1
    %s329 = scalar_lea.sflag [#allocation3], 1
    %330 = vsyncpa %s329, 1

</llo_original>
